<compile_context>
chip_gen: v7x
topology: tpu7x:2x2x1
jax: 0.10.0
libtpu: 0.0.40
codegen_flags: <defaults>
</compile_context>

<pallas_src>
import math
import functools

import jax
import jax.numpy as jnp
from jax.experimental import pallas as pl
from jax.experimental.pallas import tpu as pltpu


# ----------------------------- VMEM budget helper -----------------------------
@functools.lru_cache(maxsize=None)
def _vmem_limit_bytes():
    # v5e/v6e: 128 MiB physical (16/32 MiB default scoped); v7x: 64 MiB physical.
    try:
        return int(pltpu.get_tpu_info().vmem_capacity_bytes * 0.65)
    except Exception:
        return 64 * 1024 * 1024


# ------------------------------ tiled linear ---------------------------------
def _linear_kernel(x_ref, wt_ref, b_ref, o_ref):
    # y = x @ W^T + b ; W^T is pre-transposed + pre-cast to bf16 at prep time.
    o_ref[...] = (
        jnp.dot(x_ref[...].astype(jnp.bfloat16), wt_ref[...],
                preferred_element_type=jnp.float32)
        + b_ref[...]
    ).astype(o_ref.dtype)


def _pick_row_tile(m, d_in, d_out, vmem_limit):
    # Larger row tiles amortize the ~0.35us per-grid-step cost; budget ~1/4 of the
    # scoped VMEM for the double-buffered x(f32)/out(bf16) tiles (weight is resident,
    # single-buffered).  Yields ~1024 on v5e/v6e, ~512 on v7x for d_model=1024.
    budget = vmem_limit // 4
    for t in (1024, 512, 256, 128, 64, 32, 16, 8):
        if m % t == 0 and 2 * t * (4 * d_in + 2 * d_out) <= budget:
            return t
    return m


def linear(x, wt, b, out_dtype=jnp.bfloat16):
    # x: (M, d_in) f32, wt: (d_in, d_out) bf16 (already transposed), b: (d_out,) f32
    m, d_in = x.shape
    d_out = wt.shape[1]
    vlim = _vmem_limit_bytes()
    tm = _pick_row_tile(m, d_in, d_out, vlim)
    return pl.pallas_call(
        _linear_kernel,
        grid=(m // tm,),
        in_specs=[
            pl.BlockSpec((tm, d_in), lambda i: (i, 0)),
            # resident weight / bias: constant block index, single-buffered
            pl.BlockSpec((d_in, d_out), lambda i: (0, 0),
                         pipeline_mode=pl.Buffered(1)),
            pl.BlockSpec((1, d_out), lambda i: (0, 0),
                         pipeline_mode=pl.Buffered(1)),
        ],
        out_specs=pl.BlockSpec((tm, d_out), lambda i: (i, 0)),
        out_shape=jax.ShapeDtypeStruct((m, d_out), out_dtype),
        compiler_params=pltpu.CompilerParams(
            dimension_semantics=("parallel",), vmem_limit_bytes=vlim),
    )(x, wt, b.reshape(1, d_out))


# --------------------------- AKT attention kernel ----------------------------
def _attn_kernel(gamma_ref, q_ref, k_ref, v_ref, tri_ref, ow_ref, ob_ref,
                 o_ref, acc_ref, *, n_heads, d_k, seq_len, q_tile,
                 zero_pad, mask_delta):
    S = seq_len
    Tq = q_tile
    q_start = pl.program_id(1) * Tq

    q_all = q_ref[0]             # (Tq, d_model) bf16
    k_all = k_ref[0]             # (S,  d_model) bf16
    v_all = v_ref[0]             # (S,  d_model) bf16
    tri = tri_ref[...]           # (S, S) bf16 strictly-lower-triangular (resident)

    # Index grids (hoisted out of the per-head loop; shared by all heads).
    row = q_start + jax.lax.broadcasted_iota(jnp.int32, (Tq, S), 0)   # query pos
    col = jax.lax.broadcasted_iota(jnp.int32, (Tq, S), 1)             # key pos
    mask_b = col <= (row - mask_delta)        # AKT causal-family mask, in-kernel
    position_effect = jnp.abs(col - row).astype(jnp.float32)

    neg_inf = jnp.float32(-1e32)
    inv_sqrt_dk = jnp.float32(1.0 / math.sqrt(d_k))

    def masked_softmax(x):
        xm = jnp.where(mask_b, x, neg_inf)
        m = jnp.max(xm, axis=-1, keepdims=True)
        e = jnp.exp(xm - m)      # masked lanes underflow to exactly 0
        return e * pl.reciprocal(jnp.sum(e, axis=-1, keepdims=True), approx=True)

    # Heads fully unrolled; per-head scratch writes bound the live ranges.
    for h in range(n_heads):
        sl = slice(h * d_k, (h + 1) * d_k)
        qh, kh, vh = q_all[:, sl], k_all[:, sl], v_all[:, sl]          # bf16

        # scores = q @ k^T / sqrt(d_k)   (contract last dims; f32 accumulation)
        scores = jax.lax.dot_general(
            qh, kh, (((1,), (1,)), ((), ())),
            preferred_element_type=jnp.float32) * inv_sqrt_dk          # (Tq, S) f32

        # torch.no_grad() branch: masked softmax -> suffix sum over future keys.
        # (p @ tri)[i, j] = sum_{l > j} p[i, l] == disttotal - distcum.
        # TODO(synk): for very large S a log2(S)-step pltpu.roll shift-and-add scan
        #             would remove the S^3 term (and the resident S*S tri) entirely.
        scores_ = masked_softmax(scores)
        suffix = jnp.dot(scores_.astype(jnp.bfloat16), tri,
                         preferred_element_type=jnp.float32)           # (Tq, S) f32
        dist_scores = jnp.sqrt(jnp.maximum(suffix * position_effect, 0.0))

        gamma = gamma_ref[h]                    # scalar: -softplus(gammas[h])
        total_effect = jnp.clip(jnp.exp(dist_scores * gamma), 1e-5, 1e5)

        probs = masked_softmax(scores * total_effect)
        if zero_pad:
            probs = jnp.where(row == 0, 0.0, probs)     # zero out query row 0

        acc_ref[:, sl] = jnp.dot(probs.astype(jnp.bfloat16), vh,
                                 preferred_element_type=jnp.float32)   # (Tq, d_k)

    # Fused output projection: (Tq, d_model) @ (d_model, d_model) + bias,
    # then one lane-dense store of the final block.
    concat = acc_ref[...].astype(jnp.bfloat16)
    o_ref[0] = (jnp.dot(concat, ow_ref[...], preferred_element_type=jnp.float32)
                + ob_ref[...]).astype(o_ref.dtype)


def _pick_q_tile(S, bs):
    # Cap Tq for the 64 MiB v7x VMEM (128 for very long S), and when bs == 1 make
    # sure there are >= 2 parallel grid steps so both v7x TensorCores get work.
    cap = 128 if S >= 4096 else 256
    if S <= cap:
        tq = S
    else:
        tq = S
        for c in (256, 128, 64, 32, 16, 8):
            if c <= cap and S % c == 0:
                tq = c
                break
    if bs == 1 and tq == S and S >= 16 and (S // 2) % 8 == 0:
        tq = S // 2
    return tq


def _suffix_tri(S):
    # tri[l, j] = 1 iff l > j  (strictly lower triangular), bf16 for the MXU.
    idx = jnp.arange(S)
    return (idx[:, None] > idx[None, :]).astype(jnp.bfloat16)


def akt_attention(q, k, v, gamma_neg, tri, out_wT, out_b, *, n_heads, zero_pad,
                  mask_delta, col_block_offsets, d_model):
    # q, k, v: (bs, S, d_model) bf16 OR the fused (bs, S, 3*d_model) bf16 tensor
    # (passed three times) with per-input last-dim block offsets.
    bs, S = q.shape[0], q.shape[1]
    d_k = d_model // n_heads
    Tq = _pick_q_tile(S, bs)
    qo, ko, vo = col_block_offsets
    vlim = _vmem_limit_bytes()

    kernel = functools.partial(
        _attn_kernel, n_heads=n_heads, d_k=d_k, seq_len=S, q_tile=Tq,
        zero_pad=zero_pad, mask_delta=mask_delta)

    grid_spec = pltpu.PrefetchScalarGridSpec(
        num_scalar_prefetch=1,
        grid=(bs, S // Tq),
        in_specs=[
            pl.BlockSpec((1, Tq, d_model), lambda b, qi, g, o=qo: (b, qi, o)),
            pl.BlockSpec((1, S, d_model), lambda b, qi, g, o=ko: (b, 0, o)),
            pl.BlockSpec((1, S, d_model), lambda b, qi, g, o=vo: (b, 0, o)),
            # resident, constant-index inputs -> single-buffered
            pl.BlockSpec((S, S), lambda b, qi, g: (0, 0),
                         pipeline_mode=pl.Buffered(1)),
            pl.BlockSpec((d_model, d_model), lambda b, qi, g: (0, 0),
                         pipeline_mode=pl.Buffered(1)),
            pl.BlockSpec((1, d_model), lambda b, qi, g: (0, 0),
                         pipeline_mode=pl.Buffered(1)),
        ],
        out_specs=pl.BlockSpec((1, Tq, d_model), lambda b, qi, g: (b, qi, 0)),
        scratch_shapes=[pltpu.VMEM((Tq, d_model), jnp.float32)],
    )

    cost = pl.CostEstimate(
        flops=int(bs * (n_heads * (4 * S * S * d_k + 2 * S * S * S)
                        + 2 * S * d_model * d_model)),
        transcendentals=int(3 * bs * n_heads * S * S),
        bytes_accessed=int(bs * S * d_model * (3 * 2 + 4)
                           + 2 * S * S + 2 * d_model * d_model),
    )

    return pl.pallas_call(
        kernel,
        grid_spec=grid_spec,
        out_shape=jax.ShapeDtypeStruct((bs, S, d_model), jnp.float32),
        cost_estimate=cost,
        compiler_params=pltpu.CompilerParams(
            dimension_semantics=("parallel", "parallel"),
            vmem_limit_bytes=vlim),
    )(gamma_neg, q, k, v, tri, out_wT, out_b.reshape(1, d_model))


# ------------------------------ module glue ----------------------------------
def init_params(key, d_model, n_heads, kq_same):
    keys = jax.random.split(key, 5)
    bound = math.sqrt(6.0 / (d_model + d_model))   # xavier_uniform

    def xavier(kk):
        return jax.random.uniform(kk, (d_model, d_model), jnp.float32, -bound, bound)

    params = {
        "k_w": xavier(keys[0]), "k_b": jnp.zeros((d_model,), jnp.float32),
        "v_w": xavier(keys[1]), "v_b": jnp.zeros((d_model,), jnp.float32),
        "out_w": xavier(keys[2]), "out_b": jnp.zeros((d_model,), jnp.float32),
    }
    if not kq_same:
        params["q_w"] = xavier(keys[3])
        params["q_b"] = jnp.zeros((d_model,), jnp.float32)
    g_bound = math.sqrt(6.0 / (1 + n_heads))       # xavier for (n_heads, 1, 1)
    params["gammas"] = jax.random.uniform(
        keys[4], (n_heads, 1, 1), jnp.float32, -g_bound, g_bound)
    return params


def prepare_params(params, n_heads, kq_same):
    # Pre-transpose AND pre-cast all matmul weights to bf16 once (no per-call w.T),
    # pre-fuse QKV weights/bias, pre-negate softplus(gamma).  Biases stay f32.
    q_w = params["k_w"] if kq_same else params["q_w"]
    q_b = params["k_b"] if kq_same else params["q_b"]
    bf = lambda a: a.astype(jnp.bfloat16)
    return {
        "q_wT": bf(q_w.T), "q_b": q_b,
        "k_wT": bf(params["k_w"].T), "k_b": params["k_b"],
        "v_wT": bf(params["v_w"].T), "v_b": params["v_b"],
        "out_wT": bf(params["out_w"].T), "out_b": params["out_b"],
        "qkv_wT": bf(jnp.concatenate(
            [q_w.T, params["k_w"].T, params["v_w"].T], axis=1)),
        "qkv_b": jnp.concatenate([q_b, params["k_b"], params["v_b"]]),
        "gamma_neg": -jax.nn.softplus(params["gammas"].reshape(n_heads)),
    }


def multi_head_attention(prep, q, k, v, *, n_heads, zero_pad, mask_delta=0):
    bs, S, d_model = q.shape

    if (q is k) and (k is v):
        # Fused QKV: one (bs*S, d_model) @ (d_model, 3*d_model) bf16 matmul.
        qkv = linear(q.reshape(bs * S, d_model), prep["qkv_wT"], prep["qkv_b"])
        qkv = qkv.reshape(bs, S, 3 * d_model)
        if d_model % 128 == 0:
            # No-copy path: attention reads q/k/v directly from the fused tensor
            # via last-dim BLOCK offsets (0, 1, 2).
            q_in = k_in = v_in = qkv
            col_off = (0, 1, 2)
        else:
            # Lane-tile constraint fallback: explicit (cheap, bf16) slices.
            q_in = qkv[:, :, :d_model]
            k_in = qkv[:, :, d_model:2 * d_model]
            v_in = qkv[:, :, 2 * d_model:]
            col_off = (0, 0, 0)
    else:
        q_in = linear(q.reshape(bs * S, d_model), prep["q_wT"], prep["q_b"]).reshape(bs, S, d_model)
        k_in = linear(k.reshape(bs * S, d_model), prep["k_wT"], prep["k_b"]).reshape(bs, S, d_model)
        v_in = linear(v.reshape(bs * S, d_model), prep["v_wT"], prep["v_b"]).reshape(bs, S, d_model)
        col_off = (0, 0, 0)

    tri = _suffix_tri(S)   # built once per call, resident in VMEM across the grid

    # Attention + fused out-projection, (bs, S, d_model) layout end-to-end.
    return akt_attention(q_in, k_in, v_in, prep["gamma_neg"], tri,
                         prep["out_wT"], prep["out_b"],
                         n_heads=n_heads, zero_pad=zero_pad,
                         mask_delta=mask_delta, col_block_offsets=col_off,
                         d_model=d_model)


# --------------------------- pure-JAX f32 reference ---------------------------
def reference(params, q, k, v, mask, zero_pad, n_heads, kq_same):
    bs, S, d_model = q.shape
    d_k = d_model // n_heads

    def lin(x, w, b):
        return x @ w.T + b

    def proj(x, w, b):
        return lin(x, w, b).reshape(bs, S, n_heads, d_k).transpose(0, 2, 1, 3)

    kk = proj(k, params["k_w"], params["k_b"])
    if kq_same:
        qq = proj(q, params["k_w"], params["k_b"])
    else:
        qq = proj(q, params["q_w"], params["q_b"])
    vv = proj(v, params["v_w"], params["v_b"])

    scores = jnp.einsum("bhqd,bhkd->bhqk", qq, kk) / math.sqrt(d_k)
    scores_ = jnp.where(mask == 0, -1e32, scores)
    scores_ = jax.nn.softmax(scores_, axis=-1) * mask
    distcum = jnp.cumsum(scores_, axis=-1)
    disttotal = jnp.sum(scores_, axis=-1, keepdims=True)
    x1 = jnp.arange(S)[None, :]
    x2 = jnp.arange(S)[:, None]
    pos = jnp.abs(x1 - x2).astype(jnp.float32)[None, None]
    dist = jnp.sqrt(jnp.maximum((disttotal - distcum) * pos, 0.0))
    gamma = -jax.nn.softplus(params["gammas"])[None]   # (1, h, 1, 1)
    te = jnp.clip(jnp.exp(dist * gamma), 1e-5, 1e5)
    s2 = jnp.where(mask == 0, -1e32, scores * te)
    s2 = jax.nn.softmax(s2, axis=-1)
    if zero_pad:
        s2 = s2.at[:, :, 0, :].set(0.0)
    out = jnp.einsum("bhqk,bhkd->bhqd", s2, vv)
    concat = out.transpose(0, 2, 1, 3).reshape(bs, S, d_model)
    return lin(concat, params["out_w"], params["out_b"])


# ---------------------------------- main --------------------------------------
if __name__ == "__main__":
    bs, S, d_model, n_heads = 2, 8, 128, 4
    zero_pad = True
    mask_delta = 0   # AKT mask variant: allowed iff key <= query (tril incl. diag)

    key = jax.random.PRNGKey(0)
    kp, kq_, kk_, kv_, kx_ = jax.random.split(key, 5)
    params = init_params(kp, d_model, n_heads, kq_same=False)

    # dense mask only for the pure-JAX reference (kernel builds it from iotas)
    idx = jnp.arange(S)
    mask_dense = (idx[None, :] <= (idx[:, None] - mask_delta)).astype(jnp.float32)
    mask_dense = mask_dense.reshape(1, 1, S, S)

    # bf16 end-to-end compute => a few-% relative deviation from the f32 reference.
    MAX_TOL, MEAN_TOL = 0.15, 0.02

    # --- test 1: distinct q, k, v (general path, kq_same=False) ---
    q = jax.random.normal(kq_, (bs, S, d_model), jnp.float32)
    k = jax.random.normal(kk_, (bs, S, d_model), jnp.float32)
    v = jax.random.normal(kv_, (bs, S, d_model), jnp.float32)
    prep = prepare_params(params, n_heads, kq_same=False)
    out = multi_head_attention(prep, q, k, v, n_heads=n_heads,
                               zero_pad=zero_pad, mask_delta=mask_delta)
    out = jax.block_until_ready(out)
    ref = reference(params, q, k, v, mask_dense, zero_pad, n_heads, kq_same=False)
    assert out.shape == (bs, S, d_model)
    max_err = float(jnp.max(jnp.abs(out - ref)))
    mean_err = float(jnp.mean(jnp.abs(out - ref)))
    assert max_err < MAX_TOL and mean_err < MEAN_TOL, \
        f"general path mismatch: max={max_err:.4f} mean={mean_err:.4f}"

    # --- test 2: self-attention q=k=v (fused QKV no-copy path, kq_same=True) ---
    x = jax.random.normal(kx_, (bs, S, d_model), jnp.float32)
    prep_same = prepare_params(params, n_heads, kq_same=True)
    out2 = multi_head_attention(prep_same, x, x, x, n_heads=n_heads,
                                zero_pad=zero_pad, mask_delta=mask_delta)
    out2 = jax.block_until_ready(out2)
    ref2 = reference(params, x, x, x, mask_dense, zero_pad, n_heads, kq_same=True)
    max_err2 = float(jnp.max(jnp.abs(out2 - ref2)))
    mean_err2 = float(jnp.mean(jnp.abs(out2 - ref2)))
    assert max_err2 < MAX_TOL and mean_err2 < MEAN_TOL, \
        f"fused QKV path mismatch: max={max_err2:.4f} mean={mean_err2:.4f}"

    print("KERNEL_OK")
</pallas_src>

<mosaic_0001>
module attributes {stable_mosaic.version = 11 : i64} {
  func.func @_linear_kernel(%arg0: i32, %arg1: memref<16x128xf32, #tpu.memory_space<vmem>>, %arg2: memref<128x128xbf16, #tpu.memory_space<vmem>>, %arg3: memref<1x128xf32, #tpu.memory_space<vmem>>, %arg4: memref<16x128xbf16, #tpu.memory_space<vmem>>) attributes {dimension_semantics = [#tpu.dimension_semantics<parallel>], iteration_bounds = array<i64: 1>, scalar_prefetch = 0 : i64, scratch_operands = 0 : i64, tpu.core_type = #tpu.core_type<tc>, window_params = [{transform_indices = @transform_0, window_bounds = array<i64: 16, 128>}, {pipeline_mode = #tpu.pipeline_mode<synchronous>, transform_indices = @transform_1, window_bounds = array<i64: 128, 128>}, {pipeline_mode = #tpu.pipeline_mode<synchronous>, transform_indices = @transform_2, window_bounds = array<i64: 1, 128>}, {transform_indices = @transform_3, window_bounds = array<i64: 16, 128>}]} {
    %c0 = arith.constant 0 : index
    %c0_0 = arith.constant 0 : index
    %0 = vector.load %arg1[%c0, %c0_0] : memref<16x128xf32, #tpu.memory_space<vmem>>, vector<16x128xf32>
    %1 = arith.truncf %0 : vector<16x128xf32> to vector<16x128xbf16>
    %c0_1 = arith.constant 0 : index
    %c0_2 = arith.constant 0 : index
    %2 = vector.load %arg2[%c0_1, %c0_2] : memref<128x128xbf16, #tpu.memory_space<vmem>>, vector<128x128xbf16>
    %cst = arith.constant dense<0.000000e+00> : vector<16x128xf32>
    %3 = tpu.matmul %1, %2, %cst {dimension_numbers = #tpu.dot_dimension_numbers<[1], [0], [0], [1], [0, 0, 1, 1], [], []>} : vector<16x128xbf16>, vector<128x128xbf16>, vector<16x128xf32> -> vector<16x128xf32>
    %c0_3 = arith.constant 0 : index
    %c0_4 = arith.constant 0 : index
    %4 = vector.load %arg3[%c0_3, %c0_4] : memref<1x128xf32, #tpu.memory_space<vmem>>, vector<1x128xf32>
    %5 = vector.broadcast %4 : vector<1x128xf32> to vector<16x128xf32>
    %6 = arith.addf %3, %5 : vector<16x128xf32>
    %7 = arith.truncf %6 : vector<16x128xf32> to vector<16x128xbf16>
    %c0_5 = arith.constant 0 : index
    %c0_6 = arith.constant 0 : index
    %8 = vector.load %arg4[%c0_5, %c0_6] : memref<16x128xbf16, #tpu.memory_space<vmem>>, vector<16x128xbf16>
    tpu.vector_store %arg4[%c0_5, %c0_6], %7 {strides = array<i32>} : memref<16x128xbf16, #tpu.memory_space<vmem>>, vector<16x128xbf16>,
    return
  }
  func.func @transform_0(%arg0: i32) -> (i32, i32) {
    %c0_i32 = arith.constant 0 : i32
    %c0_i32_0 = arith.constant 0 : i32
    return %arg0, %c0_i32 : i32, i32
  }
  func.func @transform_1(%arg0: i32) -> (i32, i32) {
    %c0_i32 = arith.constant 0 : i32
    %c0_i32_0 = arith.constant 0 : i32
    %c0_i32_1 = arith.constant 0 : i32
    return %c0_i32, %c0_i32_0 : i32, i32
  }
  func.func @transform_2(%arg0: i32) -> (i32, i32) {
    %c0_i32 = arith.constant 0 : i32
    %c0_i32_0 = arith.constant 0 : i32
    %c0_i32_1 = arith.constant 0 : i32
    return %c0_i32, %c0_i32_0 : i32, i32
  }
  func.func @transform_3(%arg0: i32) -> (i32, i32) {
    %c0_i32 = arith.constant 0 : i32
    %c0_i32_0 = arith.constant 0 : i32
    return %arg0, %c0_i32 : i32, i32
  }
}

</mosaic_0001>

<llo_original>
// kernel: tpu_custom_call.1
$region0: #{tpu_custom_call.1}
  #allocation0 [shape = 'u32[]', space=smem, size = 0x4, offset = 0x4, fixed_abs, tag = 'smem constant byte address 0x4 - core index']
  #allocation1 [shape = 'u32[144,128]{1,0:T(1,128)}', space=vmem, size = 0x12000, scoped, tag = 'internal scratch']
  %s0 = inlined_call_operand.hbm [shape: f32[16,128], index: 0, kind: input, shape index: {}]
  %s1 = inlined_call_operand.hbm [shape: bf16[128,128], index: 1, kind: input, shape index: {}]
  %s2 = inlined_call_operand.hbm [shape: f32[1,128], index: 2, kind: input, shape index: {}]
  %s3 = inlined_call_operand.hbm [shape: bf16[16,128], index: 3, kind: output, shape index: {}]
  %s4 = sld [smem:[#allocation0]]
  $region34: #{tpu_custom_call.1} parent=0
    _
  %s6 = ssub.s32 1, %s4
  %s7 = scalar_select 0, %s6, %s4
  $region1: #{tpu_custom_call.1} parent=0
    #allocation2 [shape = 'u8[8192]{0}', space=vmem, size = 0x2000, scoped, tag = 'input window, operand 0, single buffered']
    #allocation3 [shape = 's32[1]{0}', space=sflag, size = 0x4, scoped, tag = 'scoped memory for tpu_custom_call.1']
    #allocation4 [shape = 's32[1]{0}', space=sflag, size = 0x4, scoped, tag = 'scoped memory for tpu_custom_call.1']
    #allocation5 [shape = 'u8[32768]{0}', space=vmem, size = 0x8000, scoped, tag = 'input window, operand 1, single buffered']
    #allocation6 [shape = 's32[1]{0}', space=sflag, size = 0x4, scoped, tag = 'scoped memory for tpu_custom_call.1']
    #allocation7 [shape = 'u8[512]{0}', space=vmem, size = 0x400, scoped, tag = 'input window, operand 2, single buffered']
    #allocation8 [shape = 'u8[4096]{0}', space=vmem, size = 0x1000, scoped, tag = 'output window, operand 0, single buffered']
    %8 = vsyncpa [#allocation3], 0
    %9 = vsyncpa [#allocation6], 0
    %10 = vsyncpa [#allocation4], 0
    // Predicated region
    $region2: #{tpu_custom_call.1} parent=1 // pred_check
      _
    $region3: #{tpu_custom_call.1} parent=1 // pred_check_branch
      %12 = sbr.rel (0) target = $region5
    $region4: #{tpu_custom_call.1} parent=1 // pred_region
      %s14 = ssub.s32 256, 256
      %15 = vsyncadd [#allocation3], %s14
      %s16 = sshll.u32 [#allocation2], 4
      %s17 = int_to_ptr.vmem [resolvable:$true] %s16
      %22 = dma.hbm_to_vmem [thread:$0]  %s0, 256, %s17, [#allocation3], 128, 128, 8
    $region5: #{tpu_custom_call.1} parent=1 // pred_fallthru
      _
    // Predicated region
    $region6: #{tpu_custom_call.1} parent=1 // pred_check
      _
    $region7: #{tpu_custom_call.1} parent=1 // pred_check_branch
      %24 = sbr.rel (0) target = $region9
    $region8: #{tpu_custom_call.1} parent=1 // pred_region
      %s26 = ssub.s32 1024, 1024
      %27 = vsyncadd [#allocation6], %s26
      %s28 = sshll.u32 [#allocation5], 4
      %s29 = int_to_ptr.vmem [resolvable:$true] %s28
      %34 = dma.hbm_to_vmem [thread:$0]  %s1, 1024, %s29, [#allocation6], 64, 64, 4
    $region9: #{tpu_custom_call.1} parent=1 // pred_fallthru
      _
    // Predicated region
    $region10: #{tpu_custom_call.1} parent=1 // pred_check
      _
    $region11: #{tpu_custom_call.1} parent=1 // pred_check_branch
      %36 = sbr.rel (0) target = $region13
    $region12: #{tpu_custom_call.1} parent=1 // pred_region
      %s38 = ssub.s32 16, 16
      %39 = vsyncadd [#allocation6], %s38
      %s41 = sshll.u32 [#allocation7], 4
      %s42 = int_to_ptr.vmem [resolvable:$true] %s41
      %44 = dma.hbm_to_vmem [thread:$0]  %s2, 16, %s42, [#allocation6]
    $region13: #{tpu_custom_call.1} parent=1 // pred_fallthru
      _
    // Predicated region
    $region14: #{tpu_custom_call.1} parent=1 // pred_check
      _
    $region15: #{tpu_custom_call.1} parent=1 // pred_check_branch
      %46 = sbr.rel (0) target = $region17
    $region16: #{tpu_custom_call.1} parent=1 // pred_region
      %47 = dma.done [#allocation3], 256
    $region17: #{tpu_custom_call.1} parent=1 // pred_fallthru
      _
    // Predicated region
    $region18: #{tpu_custom_call.1} parent=1 // pred_check
      _
    $region19: #{tpu_custom_call.1} parent=1 // pred_check_branch
      %49 = sbr.rel (0) target = $region21
    $region20: #{tpu_custom_call.1} parent=1 // pred_region
      %50 = dma.done [#allocation6], 1024
    $region21: #{tpu_custom_call.1} parent=1 // pred_fallthru
      _
    // Predicated region
    $region22: #{tpu_custom_call.1} parent=1 // pred_check
      _
    $region23: #{tpu_custom_call.1} parent=1 // pred_check_branch
      %52 = sbr.rel (0) target = $region25
    $region24: #{tpu_custom_call.1} parent=1 // pred_region
      %53 = dma.done [#allocation6], 16
    $region25: #{tpu_custom_call.1} parent=1 // pred_fallthru
      _
    %v55 = vld [vmem:[#allocation2] sm:$0xff]
    %v56 = vld [vmem:[#allocation2 + $0x8] sm:$0xff]
    %v57 = vpack.c.bf16 %v56, %v55
    %v58 = vld [vmem:[#allocation5] sm:$0xf]
    %v59 = vld [vmem:[#allocation5 + $0x4] sm:$0xf]
    %v60 = vld [vmem:[#allocation5 + $0x8] sm:$0xf]
    %v61 = vld [vmem:[#allocation5 + $0xc] sm:$0xf]
    %v62 = vld [vmem:[#allocation5 + $0x10] sm:$0xf]
    %v63 = vld [vmem:[#allocation5 + $0x14] sm:$0xf]
    %v64 = vld [vmem:[#allocation5 + $0x18] sm:$0xf]
    %v65 = vld [vmem:[#allocation5 + $0x1c] sm:$0xf]
    %v66 = vld [vmem:[#allocation5 + $0x20] sm:$0xf]
    %v67 = vld [vmem:[#allocation5 + $0x24] sm:$0xf]
    %v68 = vld [vmem:[#allocation5 + $0x28] sm:$0xf]
    %v69 = vld [vmem:[#allocation5 + $0x2c] sm:$0xf]
    %v70 = vld [vmem:[#allocation5 + $0x30] sm:$0xf]
    %v71 = vld [vmem:[#allocation5 + $0x34] sm:$0xf]
    %v72 = vld [vmem:[#allocation5 + $0x38] sm:$0xf]
    %v73 = vld [vmem:[#allocation5 + $0x3c] sm:$0xf]
    %v74 = vld [vmem:[#allocation7] sm:$0x1]
    %v76 = vlaneseq
    %v77 = vshrl.u32 %v76, 7
    %v78 = vsub.s32 0, %v77
    %v79 = vrot.slane %v74, %v78
    %v97 = vunpack.c.l.b16 %v58
    %v98 = vunpack.c.l.b16 %v59
    %v99 = vunpack.c.l.b16 %v60
    %v100 = vunpack.c.l.b16 %v61
    %v101 = vunpack.c.l.b16 %v62
    %v102 = vunpack.c.l.b16 %v63
    %v103 = vunpack.c.l.b16 %v64
    %v104 = vunpack.c.l.b16 %v65
    %v105 = vunpack.c.l.b16 %v66
    %v106 = vunpack.c.l.b16 %v67
    %v107 = vunpack.c.l.b16 %v68
    %v108 = vunpack.c.l.b16 %v69
    %v109 = vunpack.c.l.b16 %v70
    %v110 = vunpack.c.l.b16 %v71
    %v111 = vunpack.c.l.b16 %v72
    %v112 = vunpack.c.l.b16 %v73
    %v113 = vpack.c.b16 %v98, %v97
    %v114 = vpack.c.b16 %v100, %v99
    %v115 = vpack.c.b16 %v102, %v101
    %v116 = vpack.c.b16 %v104, %v103
    %v117 = vpack.c.b16 %v106, %v105
    %v118 = vpack.c.b16 %v108, %v107
    %v119 = vpack.c.b16 %v110, %v109
    %v120 = vpack.c.b16 %v112, %v111
    %129 = vmatprep.subr.bf16.mxu0 0
    %130 = vmatpush1.bf16.msra.mxu0 %v113
    %131 = vmatprep.subr.bf16.mxu0 0
    %132 = vmatpush1.bf16.msra.mxu0 %v114
    %133 = vmatprep.subr.bf16.mxu0 0
    %134 = vmatpush1.bf16.msra.mxu0 %v115
    %135 = vmatprep.subr.bf16.mxu0 0
    %136 = vmatpush1.bf16.msra.mxu0 %v116
    %137 = vmatprep.subr.bf16.mxu0 0
    %138 = vmatpush1.bf16.msra.mxu0 %v117
    %139 = vmatprep.subr.bf16.mxu0 0
    %140 = vmatpush1.bf16.msra.mxu0 %v118
    %141 = vmatprep.subr.bf16.mxu0 0
    %142 = vmatpush1.bf16.msra.mxu0 %v119
    %143 = vmatprep.subr.bf16.mxu0 0
    %144 = vmatpush1.bf16.msra.mxu0 %v120
    %145 = vmatprep.subr.bf16.mxu0 0
    %146 = vmatpush1.bf16.msra.mxu0 0
    %147 = vmatprep.subr.bf16.mxu0 0
    %148 = vmatpush1.bf16.msra.mxu0 0
    %149 = vmatprep.subr.bf16.mxu0 0
    %150 = vmatpush1.bf16.msra.mxu0 0
    %151 = vmatprep.subr.bf16.mxu0 0
    %152 = vmatpush1.bf16.msra.mxu0 0
    %153 = vmatprep.subr.bf16.mxu0 0
    %154 = vmatpush1.bf16.msra.mxu0 0
    %155 = vmatprep.subr.bf16.mxu0 0
    %156 = vmatpush1.bf16.msra.mxu0 0
    %157 = vmatprep.subr.bf16.mxu0 0
    %158 = vmatpush1.bf16.msra.mxu0 0
    %159 = vmatprep.subr.bf16.mxu0 0
    %160 = vmatpush1.bf16.msra.mxu0 0
    %161 = vmatprep.mubr.bf16.mxu0 0
    %162 = vmatmul.mubr.bf16.gmra.mrb[0].mxu0 %v57
    %v163 = vpop.f32.mrb[0].mxu0
    %v164 = vadd.f32 %v79, %v163
    %v165 = vpop.f32.mrb[0].mxu0
    %v166 = vpop.f32.mrb[0].mxu0
    %v167 = vadd.f32 %v79, %v166
    %v168 = vpop.f32.mrb[0].mxu0
    %169 = vdwg.mxu0
    %v170 = vpack.c.bf16 %v167, %v164
    %v172 = vunpack.c.l.b16 %v170
    %v173 = vunpack.c.h.b16 %v170
    %v174 = vpack.c.b16 %v172, %v172
    %v175 = vpack.c.b16 %v173, %v173
    %178 = vst [vmem:[#allocation8] sm:$0xf] %v174
    %179 = vst [vmem:[#allocation8 + $0x4] sm:$0xf] %v175
    // Predicated region
    $region26: #{tpu_custom_call.1} parent=1 // pred_check
      _
    $region27: #{tpu_custom_call.1} parent=1 // pred_check_branch
      %181 = sbr.rel (0) target = $region29
    $region28: #{tpu_custom_call.1} parent=1 // pred_region
      %s183 = ssub.s32 128, 128
      %184 = vsyncadd [#allocation4], %s183
      %s185 = sshll.u32 [#allocation8], 4
      %s186 = int_to_ptr.vmem [resolvable:$true] %s185
      %191 = dma.vmem_to_hbm [thread:$0]  %s186, 128, %s3, [#allocation4], 64, 64, 4
    $region29: #{tpu_custom_call.1} parent=1 // pred_fallthru
      _
    // Predicated region
    $region30: #{tpu_custom_call.1} parent=1 // pred_check
      _
    $region31: #{tpu_custom_call.1} parent=1 // pred_check_branch
      %193 = sbr.rel (0) target = $region33
    $region32: #{tpu_custom_call.1} parent=1 // pred_region
      %194 = dma.done [#allocation4], 128
    $region33: #{tpu_custom_call.1} parent=1 // pred_fallthru
      _
    %195 = vsyncpa [#allocation3], 1
    %196 = vsyncpa [#allocation6], 1
    %197 = vsyncpa [#allocation4], 1

</llo_original>
